<compile_context>
chip_gen: v7x
topology: tpu7x:2x2x1
jax: 0.10.0
libtpu: 0.0.40
codegen_flags: <defaults>
</compile_context>

<pallas_src>
import jax
import jax.numpy as jnp
import numpy as np
from jax import lax
from jax.experimental import pallas as pl
from jax.experimental.pallas import tpu as pltpu


def _pair_loss_kernel(xt_ref, yt_ref, fxt_ref, fyt_ref, out_ref):
    # xt/yt: [D, BN], fxt/fyt: [E, BN]  (N on the lane axis, lane-dense)
    dx = xt_ref[...].astype(jnp.float32) - yt_ref[...].astype(jnp.float32)
    ssq_f = jnp.sum(dx * dx, axis=0, keepdims=True)            # [1, BN]

    de = fxt_ref[...].astype(jnp.float32) - fyt_ref[...].astype(jnp.float32)
    ssq_e = jnp.sum(de * de, axis=0, keepdims=True)            # [1, BN]

    dist_f = jnp.sqrt(ssq_f)                                   # [1, BN]
    dist_e = jnp.sqrt(ssq_e)                                   # [1, BN]

    # mask = (d_feat > 0) & (d_feat < 0.8); zero-padded columns give d_feat==0
    # and are therefore excluded automatically.
    mask = (dist_f > 0.0) & (dist_f < 0.8)                     # [1, BN] bool

    diff = dist_e - dist_f
    # 1/dist_f == rsqrt(ssq_f): runs on the EUP.  The untaken branch may be
    # inf/NaN (rsqrt(0)) but the select discards it.
    per = jnp.where(mask, diff * diff * lax.rsqrt(ssq_f), 0.0)  # [1, BN]
    cnt = mask.astype(jnp.float32)                              # [1, BN]

    psum = jnp.sum(per)
    pcnt = jnp.sum(cnt)

    # Per-block partial (sum, count), broadcast across the 128 lanes so the
    # output tile is a lane-dense unmasked store.
    stats = jnp.concatenate(
        [jnp.broadcast_to(psum, (1, 128)), jnp.broadcast_to(pcnt, (1, 128))],
        axis=0,
    )                                                           # [2, 128]
    out_ref[...] = stats[None, :, :]                            # [1, 2, 128]


def pair_loss(x, y, f_x, f_y, size_average=True, block_n=None):
    """Pallas implementation of PairLoss.forward.

    x, y:     [N, D] feature pairs
    f_x, f_y: [N, E] embedding pairs
    """
    N, D = x.shape
    Nf, E = f_x.shape
    assert Nf == N and y.shape == (N, D) and f_y.shape == (N, E)

    # Lane-major layout: pair index N on the lane (last) axis.
    xt, yt = jnp.asarray(x).T, jnp.asarray(y).T        # [D, N]
    fxt, fyt = jnp.asarray(f_x).T, jnp.asarray(f_y).T  # [E, N]

    if block_n is None:
        # Largest lane-block (multiple of 128, capped at 4096) keeping the
        # double-buffered input tiles around ~4 MiB -> fits the default scoped
        # VMEM even on v5e (16 MiB) and leaves headroom on v7x (64 MiB phys).
        itemsize = jnp.dtype(x.dtype).itemsize
        bytes_per_col = 2 * (D + E) * itemsize
        budget = 4 * 1024 * 1024
        max_bn = max(128, (budget // (2 * bytes_per_col)) // 128 * 128)
        n_lanes = ((N + 127) // 128) * 128
        block_n = int(min(4096, max_bn, n_lanes))
    assert block_n % 128 == 0

    # Zero-pad N up to a multiple of block_n (padded columns have d_feat == 0,
    # so they never enter the mask and contribute 0 to both sum and count).
    n_pad = (-N) % block_n
    if n_pad:
        pad2 = lambda a: jnp.pad(a, ((0, 0), (0, n_pad)))
        xt, yt, fxt, fyt = pad2(xt), pad2(yt), pad2(fxt), pad2(fyt)
    num_blocks = (N + n_pad) // block_n

    partials = pl.pallas_call(
        _pair_loss_kernel,
        out_shape=jax.ShapeDtypeStruct((num_blocks, 2, 128), jnp.float32),
        grid=(num_blocks,),
        in_specs=[
            pl.BlockSpec((D, block_n), lambda i: (0, i)),
            pl.BlockSpec((D, block_n), lambda i: (0, i)),
            pl.BlockSpec((E, block_n), lambda i: (0, i)),
            pl.BlockSpec((E, block_n), lambda i: (0, i)),
        ],
        out_specs=pl.BlockSpec((1, 2, 128), lambda i: (i, 0, 0)),
        compiler_params=pltpu.CompilerParams(
            # Independent per-block partials -> parallel axis (both TCs on v7x).
            dimension_semantics=("parallel",),
            vmem_limit_bytes=32 * 1024 * 1024,
        ),
    )(xt, yt, fxt, fyt)

    loss_sum = jnp.sum(partials[:, 0, 0])
    count = jnp.sum(partials[:, 1, 0])
    if size_average:
        # Matches torch .mean() over the masked selection (NaN if empty mask).
        return loss_sum / count
    return loss_sum


def _ref_pair_loss(x, y, f_x, f_y, size_average=True):
    """Pure-JAX reference mirroring the PyTorch module."""
    df = jnp.sqrt(jnp.sum((x - y) ** 2, axis=1))
    de = jnp.sqrt(jnp.sum((f_x - f_y) ** 2, axis=1))
    mask = (df > 0.0) & (df < 0.8)
    per = jnp.where(mask, (de - df) ** 2 / jnp.where(mask, df, 1.0), 0.0)
    if size_average:
        return jnp.sum(per) / jnp.sum(mask)
    return jnp.sum(per)


if __name__ == "__main__":
    # PairLoss has no learnable parameters, so nothing to initialize.
    key = jax.random.PRNGKey(0)
    kx, ky, kfx, kfy = jax.random.split(key, 4)

    N, D, E = 200, 32, 16  # pairs, feature dim, embedding dim
    # Scale inputs so the pairwise feature distances fall inside (0, 0.8)
    # and the mask selects a nontrivial subset.
    x = jax.random.normal(kx, (N, D), dtype=jnp.float32) * 0.05
    y = jax.random.normal(ky, (N, D), dtype=jnp.float32) * 0.05
    f_x = jax.random.normal(kfx, (N, E), dtype=jnp.float32) * 0.05
    f_y = jax.random.normal(kfy, (N, E), dtype=jnp.float32) * 0.05

    # block_n=128 exercises the multi-block grid + lane padding path (N=200).
    out_mean = jax.block_until_ready(
        pair_loss(x, y, f_x, f_y, size_average=True, block_n=128))
    out_sum = jax.block_until_ready(
        pair_loss(x, y, f_x, f_y, size_average=False, block_n=128))

    ref_mean = _ref_pair_loss(x, y, f_x, f_y, size_average=True)
    ref_sum = _ref_pair_loss(x, y, f_x, f_y, size_average=False)

    assert np.allclose(np.asarray(out_mean), np.asarray(ref_mean),
                       rtol=1e-5, atol=1e-6), (out_mean, ref_mean)
    assert np.allclose(np.asarray(out_sum), np.asarray(ref_sum),
                       rtol=1e-5, atol=1e-6), (out_sum, ref_sum)

    print("KERNEL_OK")
</pallas_src>

<mosaic_0001>
module attributes {stable_mosaic.version = 11 : i64} {
  func.func @_pair_loss_kernel(%arg0: i32, %arg1: memref<32x128xf32, #tpu.memory_space<vmem>>, %arg2: memref<32x128xf32, #tpu.memory_space<vmem>>, %arg3: memref<16x128xf32, #tpu.memory_space<vmem>>, %arg4: memref<16x128xf32, #tpu.memory_space<vmem>>, %arg5: memref<1x2x128xf32, #tpu.memory_space<vmem>>) attributes {dimension_semantics = [#tpu.dimension_semantics<parallel>], iteration_bounds = array<i64: 2>, scalar_prefetch = 0 : i64, scratch_operands = 0 : i64, tpu.core_type = #tpu.core_type<tc>, window_params = [{transform_indices = @transform_0, window_bounds = array<i64: 32, 128>}, {transform_indices = @transform_1, window_bounds = array<i64: 32, 128>}, {transform_indices = @transform_2, window_bounds = array<i64: 16, 128>}, {transform_indices = @transform_3, window_bounds = array<i64: 16, 128>}, {transform_indices = @transform_4, window_bounds = array<i64: 1, 2, 128>}]} {
    %c0 = arith.constant 0 : index
    %c0_0 = arith.constant 0 : index
    %0 = vector.load %arg1[%c0, %c0_0] : memref<32x128xf32, #tpu.memory_space<vmem>>, vector<32x128xf32>
    %c0_1 = arith.constant 0 : index
    %c0_2 = arith.constant 0 : index
    %1 = vector.load %arg2[%c0_1, %c0_2] : memref<32x128xf32, #tpu.memory_space<vmem>>, vector<32x128xf32>
    %2 = arith.subf %0, %1 : vector<32x128xf32>
    %3 = arith.mulf %2, %2 : vector<32x128xf32>
    %cst = arith.constant dense<0.000000e+00> : vector<128xf32>
    %4 = vector.multi_reduction <add>, %3, %cst [0] : vector<32x128xf32> to vector<128xf32>
    %5 = vector.shape_cast %4 : vector<128xf32> to vector<1x128xf32>
    %c0_3 = arith.constant 0 : index
    %c0_4 = arith.constant 0 : index
    %6 = vector.load %arg3[%c0_3, %c0_4] : memref<16x128xf32, #tpu.memory_space<vmem>>, vector<16x128xf32>
    %c0_5 = arith.constant 0 : index
    %c0_6 = arith.constant 0 : index
    %7 = vector.load %arg4[%c0_5, %c0_6] : memref<16x128xf32, #tpu.memory_space<vmem>>, vector<16x128xf32>
    %8 = arith.subf %6, %7 : vector<16x128xf32>
    %9 = arith.mulf %8, %8 : vector<16x128xf32>
    %cst_7 = arith.constant dense<0.000000e+00> : vector<128xf32>
    %10 = vector.multi_reduction <add>, %9, %cst_7 [0] : vector<16x128xf32> to vector<128xf32>
    %11 = vector.shape_cast %10 : vector<128xf32> to vector<1x128xf32>
    %12 = math.sqrt %5 : vector<1x128xf32>
    %13 = math.sqrt %11 : vector<1x128xf32>
    %cst_8 = arith.constant 0.000000e+00 : f32
    %14 = vector.broadcast %cst_8 : f32 to vector<1x128xf32>
    %15 = arith.cmpf ogt, %12, %14 : vector<1x128xf32>
    %cst_9 = arith.constant 8.000000e-01 : f32
    %16 = vector.broadcast %cst_9 : f32 to vector<1x128xf32>
    %17 = arith.cmpf olt, %12, %16 : vector<1x128xf32>
    %18 = arith.andi %15, %17 : vector<1x128xi1>
    %19 = arith.subf %13, %12 : vector<1x128xf32>
    %20 = arith.mulf %19, %19 : vector<1x128xf32>
    %21 = math.rsqrt %5 : vector<1x128xf32>
    %22 = arith.mulf %20, %21 : vector<1x128xf32>
    %cst_10 = arith.constant 0.000000e+00 : f32
    %23 = vector.broadcast %cst_10 : f32 to vector<1x128xf32>
    %24 = arith.select %18, %22, %23 : vector<1x128xi1>, vector<1x128xf32>
    %25 = arith.extui %18 : vector<1x128xi1> to vector<1x128xi32>
    %26 = arith.sitofp %25 : vector<1x128xi32> to vector<1x128xf32>
    %27 = vector.shape_cast %24 : vector<1x128xf32> to vector<1x1x128xf32>
    %cst_11 = arith.constant dense<0.000000e+00> : vector<1xf32>
    %28 = vector.multi_reduction <add>, %27, %cst_11 [1, 2] : vector<1x1x128xf32> to vector<1xf32>
    %29 = vector.shape_cast %28 : vector<1xf32> to vector<1x1x1xf32>
    %30 = vector.extract %29[0, 0, 0] : f32 from vector<1x1x1xf32>
    %31 = vector.shape_cast %26 : vector<1x128xf32> to vector<1x1x128xf32>
    %cst_12 = arith.constant dense<0.000000e+00> : vector<1xf32>
    %32 = vector.multi_reduction <add>, %31, %cst_12 [1, 2] : vector<1x1x128xf32> to vector<1xf32>
    %33 = vector.shape_cast %32 : vector<1xf32> to vector<1x1x1xf32>
    %34 = vector.extract %33[0, 0, 0] : f32 from vector<1x1x1xf32>
    %35 = vector.broadcast %30 : f32 to vector<1x128xf32>
    %36 = vector.broadcast %34 : f32 to vector<1x128xf32>
    %37 = tpu.concatenate %35, %36 in 0 : vector<1x128xf32>, vector<1x128xf32> -> vector<2x128xf32>
    %38 = vector.shape_cast %37 : vector<2x128xf32> to vector<1x2x128xf32>
    %c0_13 = arith.constant 0 : index
    %c0_14 = arith.constant 0 : index
    %c0_15 = arith.constant 0 : index
    %39 = vector.load %arg5[%c0_13, %c0_14, %c0_15] : memref<1x2x128xf32, #tpu.memory_space<vmem>>, vector<1x2x128xf32>
    tpu.vector_store %arg5[%c0_13, %c0_14, %c0_15], %38 {strides = array<i32>} : memref<1x2x128xf32, #tpu.memory_space<vmem>>, vector<1x2x128xf32>,
    return
  }
  func.func @transform_0(%arg0: i32) -> (i32, i32) {
    %c0_i32 = arith.constant 0 : i32
    %c0_i32_0 = arith.constant 0 : i32
    return %c0_i32, %arg0 : i32, i32
  }
  func.func @transform_1(%arg0: i32) -> (i32, i32) {
    %c0_i32 = arith.constant 0 : i32
    %c0_i32_0 = arith.constant 0 : i32
    return %c0_i32, %arg0 : i32, i32
  }
  func.func @transform_2(%arg0: i32) -> (i32, i32) {
    %c0_i32 = arith.constant 0 : i32
    %c0_i32_0 = arith.constant 0 : i32
    return %c0_i32, %arg0 : i32, i32
  }
  func.func @transform_3(%arg0: i32) -> (i32, i32) {
    %c0_i32 = arith.constant 0 : i32
    %c0_i32_0 = arith.constant 0 : i32
    return %c0_i32, %arg0 : i32, i32
  }
  func.func @transform_4(%arg0: i32) -> (i32, i32, i32) {
    %c0_i32 = arith.constant 0 : i32
    %c0_i32_0 = arith.constant 0 : i32
    %c0_i32_1 = arith.constant 0 : i32
    return %arg0, %c0_i32, %c0_i32_0 : i32, i32, i32
  }
}

</mosaic_0001>

<llo_original>
// kernel: tpu_custom_call.1
$region0: #{tpu_custom_call.1}
  #allocation0 [shape = 'u32[]', space=smem, size = 0x4, offset = 0x4, fixed_abs, tag = 'smem constant byte address 0x4 - core index']
  #allocation1 [shape = 'u32[144,128]{1,0:T(1,128)}', space=vmem, size = 0x12000, scoped, tag = 'internal scratch']
  %s0 = inlined_call_operand.hbm [shape: f32[32,256], index: 0, kind: input, shape index: {}]
  %s1 = inlined_call_operand.hbm [shape: f32[32,256], index: 1, kind: input, shape index: {}]
  %s2 = inlined_call_operand.hbm [shape: f32[16,256], index: 2, kind: input, shape index: {}]
  %s3 = inlined_call_operand.hbm [shape: f32[16,256], index: 3, kind: input, shape index: {}]
  %s4 = inlined_call_operand.hbm [shape: f32[2,2,128], index: 4, kind: output, shape index: {}]
  %s5 = sld [smem:[#allocation0]]
  $region65: #{tpu_custom_call.1} parent=0
    _
  %s7 = ssub.s32 1, %s5
  %s8 = scalar_select 0, %s7, %s5
  $region1: #{tpu_custom_call.1} parent=0
    #allocation2 [shape = 'u8[32768]{0}', space=vmem, size = 0x8000, scoped, tag = 'input window, operand 0']
    #allocation3 [shape = 's32[2]{0}', space=sflag, size = 0x8, scoped, tag = 'scoped memory for tpu_custom_call.1']
    #allocation4 [shape = 's32[2]{0}', space=sflag, size = 0x8, scoped, tag = 'scoped memory for tpu_custom_call.1']
    #allocation5 [shape = 'u8[32768]{0}', space=vmem, size = 0x8000, scoped, tag = 'input window, operand 1']
    #allocation6 [shape = 's32[2]{0}', space=sflag, size = 0x8, scoped, tag = 'scoped memory for tpu_custom_call.1']
    #allocation7 [shape = 'u8[16384]{0}', space=vmem, size = 0x4000, scoped, tag = 'input window, operand 2']
    #allocation8 [shape = 'u8[16384]{0}', space=vmem, size = 0x4000, scoped, tag = 'input window, operand 3']
    #allocation9 [shape = 's32[2]{0}', space=sflag, size = 0x8, scoped, tag = 'scoped memory for tpu_custom_call.1']
    #allocation10 [shape = 'u8[2048]{0}', space=vmem, size = 0x800, scoped, tag = 'output window, operand 0']
    %9 = vsyncpa [#allocation3], 0
    %s10 = scalar_lea.sflag [#allocation3], 1
    %11 = vsyncpa %s10, 0
    %12 = vsyncpa [#allocation6], 0
    %s13 = scalar_lea.sflag [#allocation6], 1
    %14 = vsyncpa %s13, 0
    %15 = vsyncpa [#allocation9], 0
    %s16 = scalar_lea.sflag [#allocation9], 1
    %17 = vsyncpa %s16, 0
    %18 = vsyncpa [#allocation4], 0
    %s19 = scalar_lea.sflag [#allocation4], 1
    %20 = vsyncpa %s19, 0
    loop: start=0, step=1, limit=4
    $region2: #{tpu_custom_call.1} parent=1 // loop_pre_header
      _
    $region3: #{tpu_custom_call.1} parent=1 // loop_header
      %s22 = sphi 0, %s26
      %p23 = scmp.ge.s32.totalorder %s22, 4
      %s32 = sphi 0, %s34
      %s35 = sphi 0, %s32
      %s36 = sphi 0, %s35
      %s52 = sphi 0, %s36
      %s58 = sphi 0, %s60
      %s61 = sphi 0, %s58
      %s62 = sphi 0, %s61
      %s78 = sphi 0, %s62
      %s84 = sphi 0, %s86
      %s87 = sphi 0, %s84
      %s88 = sphi 0, %s87
      %s104 = sphi 0, %s88
      %s110 = sphi 0, %s112
      %s113 = sphi 0, %s110
      %s114 = sphi 0, %s113
      %s130 = sphi 0, %s114
      %s136 = sphi 0, %s138
      %s139 = sphi 0, %s136
      %s140 = sphi 0, %s139
      %s156 = sphi 0, %s140
    $region4: #{tpu_custom_call.1} parent=1 // loop_header_branch
      %25 = sbr.rel (%p23) target = $region8
    $region5: #{tpu_custom_call.1} parent=1 // loop_body
      %s27 = ssub.s32 %s22, 1
      %s28 = ssub.s32 %s22, 2
      %s29 = sadd.s32 %s22, 1
      %s30 = ssub.s32 %s22, %s29
      %p31 = scmp.eq.s32.totalorder %s30, 0
      %s33 = sadd.s32 %s32, 1
      %s34 = scalar_select %p31, %s32, %s33
      %p37 = pneg %p31
      %p38 = scmp.eq.s32.totalorder %s22, 1
      %p39 = por %p37, %p38
      %p40 = scmp.ne.s32.totalorder %s32, %s35
      %p41 = scmp.eq.s32.totalorder %s22, 0
      %p42 = por %p40, %p41
      %p43 = scmp.ne.s32.totalorder %s32, %s35
      %p44 = scmp.eq.s32.totalorder %s27, 1
      %p45 = por %p43, %p44
      %p46 = scmp.ne.s32.totalorder %s35, %s36
      %p47 = scmp.eq.s32.totalorder %s27, 0
      %p48 = por %p46, %p47
      %p49 = scmp.ne.s32.totalorder %s35, %s36
      %p50 = scmp.eq.s32.totalorder %s28, 1
      %p51 = por %p49, %p50
      %p53 = scmp.ne.s32.totalorder %s36, %s52
      %p54 = scmp.eq.s32.totalorder %s28, 0
      %p55 = por %p53, %p54
      %s56 = ssub.s32 %s22, %s29
      %p57 = scmp.eq.s32.totalorder %s56, 0
      %s59 = sadd.s32 %s58, 1
      %s60 = scalar_select %p57, %s58, %s59
      %p63 = pneg %p57
      %p64 = scmp.eq.s32.totalorder %s22, 1
      %p65 = por %p63, %p64
      %p66 = scmp.ne.s32.totalorder %s58, %s61
      %p67 = scmp.eq.s32.totalorder %s22, 0
      %p68 = por %p66, %p67
      %p69 = scmp.ne.s32.totalorder %s58, %s61
      %p70 = scmp.eq.s32.totalorder %s27, 1
      %p71 = por %p69, %p70
      %p72 = scmp.ne.s32.totalorder %s61, %s62
      %p73 = scmp.eq.s32.totalorder %s27, 0
      %p74 = por %p72, %p73
      %p75 = scmp.ne.s32.totalorder %s61, %s62
      %p76 = scmp.eq.s32.totalorder %s28, 1
      %p77 = por %p75, %p76
      %p79 = scmp.ne.s32.totalorder %s62, %s78
      %p80 = scmp.eq.s32.totalorder %s28, 0
      %p81 = por %p79, %p80
      %s82 = ssub.s32 %s22, %s29
      %p83 = scmp.eq.s32.totalorder %s82, 0
      %s85 = sadd.s32 %s84, 1
      %s86 = scalar_select %p83, %s84, %s85
      %p89 = pneg %p83
      %p90 = scmp.eq.s32.totalorder %s22, 1
      %p91 = por %p89, %p90
      %p92 = scmp.ne.s32.totalorder %s84, %s87
      %p93 = scmp.eq.s32.totalorder %s22, 0
      %p94 = por %p92, %p93
      %p95 = scmp.ne.s32.totalorder %s84, %s87
      %p96 = scmp.eq.s32.totalorder %s27, 1
      %p97 = por %p95, %p96
      %p98 = scmp.ne.s32.totalorder %s87, %s88
      %p99 = scmp.eq.s32.totalorder %s27, 0
      %p100 = por %p98, %p99
      %p101 = scmp.ne.s32.totalorder %s87, %s88
      %p102 = scmp.eq.s32.totalorder %s28, 1
      %p103 = por %p101, %p102
      %p105 = scmp.ne.s32.totalorder %s88, %s104
      %p106 = scmp.eq.s32.totalorder %s28, 0
      %p107 = por %p105, %p106
      %s108 = ssub.s32 %s22, %s29
      %p109 = scmp.eq.s32.totalorder %s108, 0
      %s111 = sadd.s32 %s110, 1
      %s112 = scalar_select %p109, %s110, %s111
      %p115 = pneg %p109
      %p116 = scmp.eq.s32.totalorder %s22, 1
      %p117 = por %p115, %p116
      %p118 = scmp.ne.s32.totalorder %s110, %s113
      %p119 = scmp.eq.s32.totalorder %s22, 0
      %p120 = por %p118, %p119
      %p121 = scmp.ne.s32.totalorder %s110, %s113
      %p122 = scmp.eq.s32.totalorder %s27, 1
      %p123 = por %p121, %p122
      %p124 = scmp.ne.s32.totalorder %s113, %s114
      %p125 = scmp.eq.s32.totalorder %s27, 0
      %p126 = por %p124, %p125
      %p127 = scmp.ne.s32.totalorder %s113, %s114
      %p128 = scmp.eq.s32.totalorder %s28, 1
      %p129 = por %p127, %p128
      %p131 = scmp.ne.s32.totalorder %s114, %s130
      %p132 = scmp.eq.s32.totalorder %s28, 0
      %p133 = por %p131, %p132
      %s134 = ssub.s32 %s22, %s29
      %p135 = scmp.eq.s32.totalorder %s134, 0
      %s137 = sadd.s32 %s136, 1
      %s138 = scalar_select %p135, %s136, %s137
      %p141 = pneg %p135
      %p142 = scmp.eq.s32.totalorder %s22, 1
      %p143 = por %p141, %p142
      %p144 = scmp.ne.s32.totalorder %s136, %s139
      %p145 = scmp.eq.s32.totalorder %s22, 0
      %p146 = por %p144, %p145
      %p147 = scmp.ne.s32.totalorder %s136, %s139
      %p148 = scmp.eq.s32.totalorder %s27, 1
      %p149 = por %p147, %p148
      %p150 = scmp.ne.s32.totalorder %s139, %s140
      %p151 = scmp.eq.s32.totalorder %s27, 0
      %p152 = por %p150, %p151
      %p153 = scmp.ne.s32.totalorder %s139, %s140
      %p154 = scmp.eq.s32.totalorder %s28, 1
      %p155 = por %p153, %p154
      %p157 = scmp.ne.s32.totalorder %s140, %s156
      %p158 = scmp.eq.s32.totalorder %s28, 0
      %p159 = por %p157, %p158
      %p160 = scmp.le.s32.totalorder 1, %s22
      %p161 = scmp.lt.s32.totalorder %s22, 3
      %p162 = pnand %p160, %p161
      %p163 = pneg %p162
      // Predicated region
      $region9: #{tpu_custom_call.1} parent=5 // pred_check
        _
      $region10: #{tpu_custom_call.1} parent=5 // pred_check_branch
        %165 = sbr.rel (%p162) target = $region12
      $region11: #{tpu_custom_call.1} parent=5 // pred_region
        %s166 = ssub.s32 %s22, 1
      $region12: #{tpu_custom_call.1} parent=5 // pred_fallthru
        _
      %p167 = scmp.lt.s32.totalorder %s22, 2
      // Predicated region
      $region13: #{tpu_custom_call.1} parent=5 // pred_check
        %p168 = pneg %p167
      $region14: #{tpu_custom_call.1} parent=5 // pred_check_branch
        %170 = sbr.rel (%p168) target = $region16
      $region15: #{tpu_custom_call.1} parent=5 // pred_region
        // Predicated region
        $region17: #{tpu_custom_call.1} parent=15 // pred_check
          %p171 = pneg %p42
        $region18: #{tpu_custom_call.1} parent=15 // pred_check_branch
          %173 = sbr.rel (%p171) target = $region20
        $region19: #{tpu_custom_call.1} parent=15 // pred_region
          %s174 = sand.u32 %s32, 1
          %s175 = scalar_lea.sflag [#allocation3], %s174
          %s176 = sand.u32 %s32, 1
          %s177 = smul.addr %s176, 32
          %s178 = scalar_lea.vmem [#allocation2], %s177
          %s180 = ssub.s32 512, 512
          %181 = vsyncadd %s175, %s180
          %s182 = smul.addr %s22, 128
          %s183 = scalar_lea.hbm %s0, %s182
          %s184 = sshll.u32 %s178, 4
          %s185 = int_to_ptr.vmem [resolvable:$true] %s184
          %190 = dma.hbm_to_vmem [thread:$0]  %s183, 512, %s185, %s175, 256, 128, 8
        $region20: #{tpu_custom_call.1} parent=15 // pred_fallthru
          _
        // Predicated region
        $region21: #{tpu_custom_call.1} parent=15 // pred_check
          %p191 = pneg %p68
        $region22: #{tpu_custom_call.1} parent=15 // pred_check_branch
          %193 = sbr.rel (%p191) target = $region24
        $region23: #{tpu_custom_call.1} parent=15 // pred_region
          %s194 = sand.u32 %s22, 1
          %s195 = scalar_lea.sflag [#allocation6], %s194
          %s196 = sand.u32 %s58, 1
          %s197 = smul.addr %s196, 32
          %s198 = scalar_lea.vmem [#allocation5], %s197
          %s200 = ssub.s32 512, 512
          %201 = vsyncadd %s195, %s200
          %s202 = smul.addr %s22, 128
          %s203 = scalar_lea.hbm %s1, %s202
          %s204 = sshll.u32 %s198, 4
          %s205 = int_to_ptr.vmem [resolvable:$true] %s204
          %210 = dma.hbm_to_vmem [thread:$0]  %s203, 512, %s205, %s195, 256, 128, 8
        $region24: #{tpu_custom_call.1} parent=15 // pred_fallthru
          _
        // Predicated region
        $region25: #{tpu_custom_call.1} parent=15 // pred_check
          %p211 = pneg %p94
        $region26: #{tpu_custom_call.1} parent=15 // pred_check_branch
          %213 = sbr.rel (%p211) target = $region28
        $region27: #{tpu_custom_call.1} parent=15 // pred_region
          %s214 = sand.u32 %s22, 1
          %s215 = scalar_lea.sflag [#allocation6], %s214
          %s216 = sand.u32 %s84, 1
          %s217 = smul.addr %s216, 16
          %s218 = scalar_lea.vmem [#allocation7], %s217
          %s220 = ssub.s32 256, 256
          %221 = vsyncadd %s215, %s220
          %s222 = smul.addr %s22, 128
          %s223 = scalar_lea.hbm %s2, %s222
          %s224 = sshll.u32 %s218, 4
          %s225 = int_to_ptr.vmem [resolvable:$true] %s224
          %230 = dma.hbm_to_vmem [thread:$0]  %s223, 256, %s225, %s215, 256, 128, 8
        $region28: #{tpu_custom_call.1} parent=15 // pred_fallthru
          _
        // Predicated region
        $region29: #{tpu_custom_call.1} parent=15 // pred_check
          %p231 = pneg %p120
        $region30: #{tpu_custom_call.1} parent=15 // pred_check_branch
          %233 = sbr.rel (%p231) target = $region32
        $region31: #{tpu_custom_call.1} parent=15 // pred_region
          %s234 = sand.u32 %s110, 1
          %s235 = scalar_lea.sflag [#allocation9], %s234
          %s236 = sand.u32 %s110, 1
          %s237 = smul.addr %s236, 16
          %s238 = scalar_lea.vmem [#allocation8], %s237
          %s240 = ssub.s32 256, 256
          %241 = vsyncadd %s235, %s240
          %s242 = smul.addr %s22, 128
          %s243 = scalar_lea.hbm %s3, %s242
          %s244 = sshll.u32 %s238, 4
          %s245 = int_to_ptr.vmem [resolvable:$true] %s244
          %250 = dma.hbm_to_vmem [thread:$0]  %s243, 256, %s245, %s235, 256, 128, 8
        $region32: #{tpu_custom_call.1} parent=15 // pred_fallthru
          _
      $region16: #{tpu_custom_call.1} parent=5 // pred_fallthru
        _
      %p251 = scmp.le.s32.totalorder 1, %s22
      %p252 = scmp.lt.s32.totalorder %s22, 3
      %p253 = pnand %p251, %p252
      %p254 = pneg %p253
      // Predicated region
      $region33: #{tpu_custom_call.1} parent=5 // pred_check
        _
      $region34: #{tpu_custom_call.1} parent=5 // pred_check_branch
        %256 = sbr.rel (%p253) target = $region36
      $region35: #{tpu_custom_call.1} parent=5 // pred_region
        %s257 = ssub.s32 %s22, 1
        %s258 = sand.u32 %s35, 1
        %s259 = scalar_lea.sflag [#allocation3], %s258
        %s260 = sand.u32 %s35, 1
        %s261 = smul.addr %s260, 32
        %s262 = scalar_lea.vmem [#allocation2], %s261
        // Predicated region
        $region37: #{tpu_custom_call.1} parent=35 // pred_check
          %p263 = pneg %p48
        $region38: #{tpu_custom_call.1} parent=35 // pred_check_branch
          %265 = sbr.rel (%p263) target = $region40
        $region39: #{tpu_custom_call.1} parent=35 // pred_region
          %266 = dma.done %s259, 512
        $region40: #{tpu_custom_call.1} parent=35 // pred_fallthru
          _
        %s267 = sand.u32 %s27, 1
        %s268 = scalar_lea.sflag [#allocation6], %s267
        %s269 = sand.u32 %s61, 1
        %s270 = smul.addr %s269, 32
        %s271 = scalar_lea.vmem [#allocation5], %s270
        // Predicated region
        $region41: #{tpu_custom_call.1} parent=35 // pred_check
          %p272 = pneg %p74
        $region42: #{tpu_custom_call.1} parent=35 // pred_check_branch
          %274 = sbr.rel (%p272) target = $region44
        $region43: #{tpu_custom_call.1} parent=35 // pred_region
          %275 = dma.done %s268, 512
        $region44: #{tpu_custom_call.1} parent=35 // pred_fallthru
          _
        %s276 = sand.u32 %s27, 1
        %s277 = scalar_lea.sflag [#allocation6], %s276
        %s278 = sand.u32 %s87, 1
        %s279 = smul.addr %s278, 16
        %s280 = scalar_lea.vmem [#allocation7], %s279
        // Predicated region
        $region45: #{tpu_custom_call.1} parent=35 // pred_check
          %p281 = pneg %p100
        $region46: #{tpu_custom_call.1} parent=35 // pred_check_branch
          %283 = sbr.rel (%p281) target = $region48
        $region47: #{tpu_custom_call.1} parent=35 // pred_region
          %284 = dma.done %s277, 256
        $region48: #{tpu_custom_call.1} parent=35 // pred_fallthru
          _
        %s285 = sand.u32 %s113, 1
        %s286 = scalar_lea.sflag [#allocation9], %s285
        %s287 = sand.u32 %s113, 1
        %s288 = smul.addr %s287, 16
        %s289 = scalar_lea.vmem [#allocation8], %s288
        // Predicated region
        $region49: #{tpu_custom_call.1} parent=35 // pred_check
          %p290 = pneg %p126
        $region50: #{tpu_custom_call.1} parent=35 // pred_check_branch
          %292 = sbr.rel (%p290) target = $region52
        $region51: #{tpu_custom_call.1} parent=35 // pred_region
          %293 = dma.done %s286, 256
        $region52: #{tpu_custom_call.1} parent=35 // pred_fallthru
          _
        %s294 = sand.u32 %s35, 1
        %s295 = scalar_lea.sflag [#allocation3], %s294
        %s296 = sand.u32 %s35, 1
        %s297 = smul.addr %s296, 32
        %s298 = scalar_lea.vmem [#allocation2], %s297
        %p299 = pneg %p48
        %p300 = pneg %p45
        %s301 = sand.u32 %s27, 1
        %s302 = scalar_lea.sflag [#allocation6], %s301
        %s303 = sand.u32 %s61, 1
        %s304 = smul.addr %s303, 32
        %s305 = scalar_lea.vmem [#allocation5], %s304
        %p306 = pneg %p74
        %p307 = pneg %p71
        %s308 = sand.u32 %s27, 1
        %s309 = scalar_lea.sflag [#allocation6], %s308
        %s310 = sand.u32 %s87, 1
        %s311 = smul.addr %s310, 16
        %s312 = scalar_lea.vmem [#allocation7], %s311
        %p313 = pneg %p100
        %p314 = pneg %p97
        %s315 = sand.u32 %s113, 1
        %s316 = scalar_lea.sflag [#allocation9], %s315
        %s317 = sand.u32 %s113, 1
        %s318 = smul.addr %s317, 16
        %s319 = scalar_lea.vmem [#allocation8], %s318
        %p320 = pneg %p126
        %p321 = pneg %p123
        %p322 = pneg %p152
        %p323 = pneg %p149
        %s324 = sand.u32 %s139, 1
        %s325 = scalar_lea.sflag [#allocation4], %s324
        %s326 = sand.u32 %s139, 1
        %s327 = smul.addr %s326, 2
        %s328 = scalar_lea.vmem [#allocation10], %s327
        %v329 = vld [vmem:[%s262] sm:$0xff]
        %v330 = vld [vmem:[%s262 + $0x8] sm:$0xff]
        %v331 = vld [vmem:[%s262 + $0x10] sm:$0xff]
        %v332 = vld [vmem:[%s262 + $0x18] sm:$0xff]
        %v333 = vld [vmem:[%s271] sm:$0xff]
        %v334 = vld [vmem:[%s271 + $0x8] sm:$0xff]
        %v335 = vld [vmem:[%s271 + $0x10] sm:$0xff]
        %v336 = vld [vmem:[%s271 + $0x18] sm:$0xff]
        %v337 = vsub.f32 %v329, %v333
        %v338 = vsub.f32 %v330, %v334
        %v339 = vsub.f32 %v331, %v335
        %v340 = vsub.f32 %v332, %v336
        %v341 = vmul.f32 %v337, %v337
        %v342 = vmul.f32 %v338, %v338
        %v343 = vmul.f32 %v339, %v339
        %v344 = vmul.f32 %v340, %v340
        %v345 = vadd.f32 %v341, %v342
        %v346 = vadd.f32 %v345, %v343
        %v347 = vadd.f32 %v346, %v344
        %v348 = vrot.slane %v347, 4
        %v349 = vadd.f32 %v347, %v348
        %v350 = vrot.slane %v349, 2
        %v351 = vadd.f32 %v349, %v350
        %v352 = vrot.slane %v351, 1
        %v353 = vadd.f32 %v351, %v352
        %v354 = vld [vmem:[%s280] sm:$0xff]
        %v355 = vld [vmem:[%s280 + $0x8] sm:$0xff]
        %v356 = vld [vmem:[%s289] sm:$0xff]
        %v357 = vld [vmem:[%s289 + $0x8] sm:$0xff]
        %v358 = vsub.f32 %v354, %v356
        %v359 = vsub.f32 %v355, %v357
        %v360 = vmul.f32 %v358, %v358
        %v361 = vmul.f32 %v359, %v359
        %v362 = vadd.f32 %v360, %v361
        %v363 = vrot.slane %v362, 4
        %v364 = vadd.f32 %v362, %v363
        %v365 = vrot.slane %v364, 2
        %v366 = vadd.f32 %v364, %v365
        %v367 = vrot.slane %v366, 1
        %v368 = vadd.f32 %v366, %v367
        %v369 = vrsqrt.pop %v353
        %v370 = vmul.f32 %v353, %v369
        %vm371 = vcmp.eq.f32.partialorder %v353, inf
        %v372 = vsel %vm371, %v353, %v370
        %vm373 = vcmp.eq.f32.partialorder %v353, 0.0
        %v374 = vand.u32 %v353, 2147483648
        %v375 = vsel %vm373, %v374, %v372
        %v376 = vrsqrt.pop %v368
        %v377 = vmul.f32 %v368, %v376
        %vm378 = vcmp.eq.f32.partialorder %v368, inf
        %v379 = vsel %vm378, %v368, %v377
        %vm380 = vcmp.eq.f32.partialorder %v368, 0.0
        %v381 = vand.u32 %v368, 2147483648
        %v382 = vsel %vm380, %v381, %v379
        %vm383 = vcmp.gt.f32.partialorder %v375, 0.0
        %vm384 = vcmp.lt.f32.partialorder %v375, 0.8
        %vm385 = vmand %vm383, %vm384
        %v386 = vsub.f32 %v382, %v375
        %v387 = vmul.f32 %v386, %v386
        %v388 = vrsqrt.pop %v353
        %v389 = vmul.f32 %v387, %v388
        %v390 = vsel %vm385, %v389, 0.0
        %v391 = vsel %vm385, 1, 0
        %v392 = vcvt.s32.f32 %v391
        %vm393 = vcmask 1040384
        %v394 = vsel %vm393, %v390, 0.0
        %395 = vadd.xlane.f32.xlu0 %v394
        %v396 = vpop.xlane.xlu0 %395
        %v397 = vrot.slane %v396, 4
        %v398 = vadd.f32 %v396, %v397
        %v399 = vrot.slane %v398, 2
        %v400 = vadd.f32 %v398, %v399
        %v401 = vrot.slane %v400, 1
        %v402 = vadd.f32 %v400, %v401
        %s403 = vtos %v402
        %v404 = vsel %vm393, %v392, 0.0
        %405 = vadd.xlane.f32.xlu0 %v404
        %v406 = vpop.xlane.xlu0 %405
        %v407 = vrot.slane %v406, 4
        %v408 = vadd.f32 %v406, %v407
        %v409 = vrot.slane %v408, 2
        %v410 = vadd.f32 %v408, %v409
        %v411 = vrot.slane %v410, 1
        %v412 = vadd.f32 %v410, %v411
        %s413 = vtos %v412
        %v414 = vstv %s403
        %v415 = vstv %s413
        %v416 = vsel %vm393, %v414, %v415
        %417 = vst [vmem:[%s328] sm:$0x3] %v416
        %s418 = sand.u32 %s139, 1
        %s419 = scalar_lea.sflag [#allocation4], %s418
        %s420 = sand.u32 %s139, 1
        %s421 = smul.addr %s420, 2
        %s422 = scalar_lea.vmem [#allocation10], %s421
        // Predicated region
        $region53: #{tpu_custom_call.1} parent=35 // pred_check
          %p423 = pneg %p149
        $region54: #{tpu_custom_call.1} parent=35 // pred_check_branch
          %425 = sbr.rel (%p423) target = $region56
        $region55: #{tpu_custom_call.1} parent=35 // pred_region
          %s427 = ssub.s32 32, 32
          %428 = vsyncadd %s419, %s427
          %s429 = smul.addr %s27, 32
          %s430 = scalar_lea.hbm %s4, %s429
          %s432 = sshll.u32 %s422, 4
          %s433 = int_to_ptr.vmem [resolvable:$true] %s432
          %435 = dma.vmem_to_hbm [thread:$0]  %s433, 32, %s430, %s419
        $region56: #{tpu_custom_call.1} parent=35 // pred_fallthru
          _
      $region36: #{tpu_custom_call.1} parent=5 // pred_fallthru
        _
      %p436 = scmp.le.s32.totalorder 2, %s22
      // Predicated region
      $region57: #{tpu_custom_call.1} parent=5 // pred_check
        %p437 = pneg %p436
      $region58: #{tpu_custom_call.1} parent=5 // pred_check_branch
        %439 = sbr.rel (%p437) target = $region60
      $region59: #{tpu_custom_call.1} parent=5 // pred_region
        %s440 = ssub.s32 %s22, 2
        // Predicated region
        $region61: #{tpu_custom_call.1} parent=59 // pred_check
          %p441 = pneg %p155
        $region62: #{tpu_custom_call.1} parent=59 // pred_check_branch
          %443 = sbr.rel (%p441) target = $region64
        $region63: #{tpu_custom_call.1} parent=59 // pred_region
          %s444 = sand.u32 %s140, 1
          %s445 = scalar_lea.sflag [#allocation4], %s444
          %s446 = sand.u32 %s140, 1
          %s447 = smul.addr %s446, 2
          %s448 = scalar_lea.vmem [#allocation10], %s447
          %449 = dma.done %s445, 32
        $region64: #{tpu_custom_call.1} parent=59 // pred_fallthru
          _
      $region60: #{tpu_custom_call.1} parent=5 // pred_fallthru
        _
    $region6: #{tpu_custom_call.1} parent=1 // loop_footer
      %s26 = sadd.s32 1, %s22
    $region7: #{tpu_custom_call.1} parent=1 // loop_footer_branch
      %21 = sbr.rel target = $region3
    $region8: #{tpu_custom_call.1} parent=1 // loop_exit
      _
    %450 = vsyncpa [#allocation3], 1
    %s451 = scalar_lea.sflag [#allocation3], 1
    %452 = vsyncpa %s451, 1
    %453 = vsyncpa [#allocation6], 1
    %s454 = scalar_lea.sflag [#allocation6], 1
    %455 = vsyncpa %s454, 1
    %456 = vsyncpa [#allocation9], 1
    %s457 = scalar_lea.sflag [#allocation9], 1
    %458 = vsyncpa %s457, 1
    %459 = vsyncpa [#allocation4], 1
    %s460 = scalar_lea.sflag [#allocation4], 1
    %461 = vsyncpa %s460, 1

</llo_original>
